<compile_context>
chip_gen: v7x
topology: tpu7x:2x2x1
jax: 0.10.0
libtpu: 0.0.40
codegen_flags: <defaults>
</compile_context>

<pallas_src>
import jax
import jax.numpy as jnp
from jax.experimental import pallas as pl
from jax.experimental.pallas import tpu as pltpu

T = 4  # sequence length is hard-coded (day1..day4) in the module's forward


def lstm_kernel(params_ref, x_ref, out_ref):
    # params_ref: SMEM (12,) f32
    #   [wlr1, wlr2, blr1, wpr1, wpr2, bpr1, wp1, wp2, bp1, wo1, wo2, bo1]
    # x_ref:      VMEM (T, tm, tn) f32
    # out_ref:    VMEM (tm, tn)    f32
    f32 = jnp.float32
    half = f32(0.5)
    one = f32(1.0)

    # Pre-scaled scalar weights: scalar-unit math on SMEM reads.  They stay
    # 0-d, so each vector use is a single sreg->vreg splat (no tile-sized
    # constants materialized in VMEM).
    # sigmoid(z) = 0.5 * tanh(0.5 * z) + 0.5  ->  fold the 0.5 into the gate
    # weights here so each sigmoid costs one EUP tanh per step.
    hwlr1 = half * params_ref[0]
    hwlr2 = half * params_ref[1]
    hblr1 = half * params_ref[2]
    hwpr1 = half * params_ref[3]
    hwpr2 = half * params_ref[4]
    hbpr1 = half * params_ref[5]
    wp1 = params_ref[6]
    wp2 = params_ref[7]
    bp1 = params_ref[8]
    hwo1 = half * params_ref[9]
    hwo2 = half * params_ref[10]
    hbo1 = half * params_ref[11]

    blk = out_ref.shape
    long_mem = jnp.zeros(blk, f32)
    short_mem = jnp.zeros(blk, f32)

    for t in range(x_ref.shape[0]):  # static unroll: T == 4, fixed by the module
        x = x_ref[t]
        # a = 2*long_remember_pct - 1, b = 2*potential_remember_pct - 1
        a = jnp.tanh(hwlr1 * short_mem + hwlr2 * x + hblr1)
        b = jnp.tanh(hwpr1 * short_mem + hwpr2 * x + hbpr1)
        pot_memory = jnp.tanh(wp1 * short_mem + wp2 * x + bp1)
        # updated_long = lr*long + pr*pm = 0.5*((a+1)*long + (b+1)*pm)
        updated_long = half * ((a + one) * long_mem + (b + one) * pot_memory)
        c = jnp.tanh(hwo1 * short_mem + hwo2 * x + hbo1)  # 2*output_pct - 1
        output_pct = half * c + half
        updated_short = output_pct * jnp.tanh(updated_long)
        # Reproduce the PyTorch unpacking swap exactly:
        #   long_memory, short_memory = [updated_short, updated_long]
        long_mem = updated_short
        short_mem = updated_long

    out_ref[...] = short_mem


def _round_up(v, m):
    return (v + m - 1) // m * m


def _pow2_floor(v, base):
    """Largest base * 2^k <= v (assumes v >= base). Keeps row padding small."""
    p = base
    while p * 2 <= v:
        p *= 2
    return p


def lstm_forward(params, x, *, block_n_cap=2048, vmem_budget_bytes=14 * 1024 * 1024):
    """params: (12,) f32; x: (T=4, M, N) -> (M, N) f32."""
    seq, M, N = x.shape
    assert seq == T, f"module forward expects exactly {T} days, got {seq}"
    params = params.astype(jnp.float32)
    x = x.astype(jnp.float32)

    LANE, SUB = 128, 8

    # Lane dimension: prefer tn = full (padded) N so each day's DMA row is one
    # contiguous run and output stores are unmasked; cap only for very wide N.
    tn = min(_round_up(N, LANE), _round_up(block_n_cap, LANE))
    Np = _round_up(N, tn)

    # Row dimension from a per-grid-step VMEM budget:
    #   double-buffered x tile   : 2 * T * tm * tn * 4 B
    #   double-buffered out tile : 2 * tm * tn * 4 B
    #   ~6 tile-sized temporaries for the unrolled gate math
    # Budget default (14 MiB) stays under v5e's 16 MiB scoped-VMEM default and
    # well under v6e/v7x's 32 MiB, so no vmem_limit_bytes override is needed.
    per_row_bytes = (2 * T + 2 + 6) * tn * 4
    tm = max(SUB, (vmem_budget_bytes // per_row_bytes) // SUB * SUB)

    Mp0 = _round_up(M, SUB)
    if Mp0 >= 2 * SUB:
        # Force >= 2 row-blocks so both TensorCores get work on v7x megacore.
        tm = min(tm, _round_up(Mp0, 2 * SUB) // 2)
    tm = min(tm, Mp0)
    tm = _pow2_floor(tm, SUB)
    Mp = _round_up(M, tm)

    grid = (Mp // tm, Np // tn)

    pad_m, pad_n = Mp - M, Np - N
    xp = x if (pad_m == 0 and pad_n == 0) else jnp.pad(
        x, ((0, 0), (0, pad_m), (0, pad_n)))

    # Advisory cost: ~25 VALU flops + 5 tanh per element per step.
    cost = pl.CostEstimate(
        flops=25 * T * Mp * Np,
        transcendentals=5 * T * Mp * Np,
        bytes_accessed=4 * (T * Mp * Np + Mp * Np + 12),
    )

    out = pl.pallas_call(
        lstm_kernel,
        out_shape=jax.ShapeDtypeStruct((Mp, Np), jnp.float32),
        grid=grid,
        in_specs=[
            pl.BlockSpec(memory_space=pltpu.SMEM),               # 12 scalar params
            pl.BlockSpec((T, tm, tn), lambda i, j: (0, i, j)),   # x tile (full T)
        ],
        out_specs=pl.BlockSpec((tm, tn), lambda i, j: (i, j)),   # lane-dense out
        compiler_params=pltpu.CompilerParams(
            dimension_semantics=("parallel", "parallel")),       # megacore on v7x
        cost_estimate=cost,
    )(params, xp)

    if pad_m or pad_n:
        out = out[:M, :N]
    return out


def lstm_reference(params, x):
    """Plain-JAX reference with identical semantics (including the swap)."""
    (wlr1, wlr2, blr1, wpr1, wpr2, bpr1,
     wp1, wp2, bp1, wo1, wo2, bo1) = [params[i] for i in range(12)]
    long_mem = jnp.zeros_like(x[0])
    short_mem = jnp.zeros_like(x[0])
    for t in range(x.shape[0]):
        xv = x[t]
        lr = jax.nn.sigmoid(wlr1 * short_mem + wlr2 * xv + blr1)
        pr = jax.nn.sigmoid(wpr1 * short_mem + wpr2 * xv + bpr1)
        pm = jnp.tanh(wp1 * short_mem + wp2 * xv + bp1)
        ul = lr * long_mem + pr * pm
        op = jax.nn.sigmoid(wo1 * short_mem + wo2 * xv + bo1)
        us = op * jnp.tanh(ul)
        long_mem, short_mem = us, ul
    return short_mem


if __name__ == "__main__":
    key = jax.random.PRNGKey(0)
    k_w, k_x, k_x2 = jax.random.split(key, 3)

    # 8 normally-distributed scalar weights, 4 zero biases, ordered as:
    # [wlr1, wlr2, blr1, wpr1, wpr2, bpr1, wp1, wp2, bp1, wo1, wo2, bo1]
    w = jax.random.normal(k_w, (8,), dtype=jnp.float32)
    params = jnp.array(
        [w[0], w[1], 0.0, w[2], w[3], 0.0, w[4], w[5], 0.0, w[6], w[7], 0.0],
        dtype=jnp.float32,
    )

    # Aligned case: 4 days, batch packed lane-dense into (M=16, N=512).
    # Tiling resolves to tm=8, tn=512 -> grid (2, 1), both axes "parallel".
    M, N = 16, 512
    x = jax.random.normal(k_x, (T, M, N), dtype=jnp.float32)
    ref = lstm_reference(params, x)
    out = jax.block_until_ready(lstm_forward(params, x))
    assert out.shape == (M, N)
    assert jnp.allclose(out, ref, atol=1e-4, rtol=1e-4), \
        float(jnp.max(jnp.abs(out - ref)))

    # Unaligned case: exercises the wrapper-side padding to (8,128) multiples
    # and the output slice (keeps the unmasked lane-dense store path).
    M2, N2 = 13, 300
    x2 = jax.random.normal(k_x2, (T, M2, N2), dtype=jnp.float32)
    ref2 = lstm_reference(params, x2)
    out2 = jax.block_until_ready(lstm_forward(params, x2))
    assert out2.shape == (M2, N2)
    assert jnp.allclose(out2, ref2, atol=1e-4, rtol=1e-4), \
        float(jnp.max(jnp.abs(out2 - ref2)))

    print("KERNEL_OK")
</pallas_src>

<mosaic_0001>
module attributes {stable_mosaic.version = 11 : i64} {
  func.func @lstm_kernel(%arg0: i32, %arg1: i32, %arg2: memref<12xf32, #tpu.memory_space<smem>>, %arg3: memref<4x8x512xf32, #tpu.memory_space<vmem>>, %arg4: memref<8x512xf32, #tpu.memory_space<vmem>>) attributes {dimension_semantics = [#tpu.dimension_semantics<parallel>, #tpu.dimension_semantics<parallel>], iteration_bounds = array<i64: 2, 1>, scalar_prefetch = 0 : i64, scratch_operands = 0 : i64, tpu.core_type = #tpu.core_type<tc>, window_params = [{transform_indices = @transform_0, window_bounds = array<i64: 12>}, {transform_indices = @transform_1, window_bounds = array<i64: 4, 8, 512>}, {transform_indices = @transform_2, window_bounds = array<i64: 8, 512>}]} {
    %c0 = arith.constant 0 : index
    %0 = memref.load %arg2[%c0] : memref<12xf32, #tpu.memory_space<smem>>
    %cst = arith.constant 5.000000e-01 : f32
    %1 = arith.mulf %cst, %0 : f32
    %c1 = arith.constant 1 : index
    %2 = memref.load %arg2[%c1] : memref<12xf32, #tpu.memory_space<smem>>
    %cst_0 = arith.constant 5.000000e-01 : f32
    %3 = arith.mulf %cst_0, %2 : f32
    %c2 = arith.constant 2 : index
    %4 = memref.load %arg2[%c2] : memref<12xf32, #tpu.memory_space<smem>>
    %cst_1 = arith.constant 5.000000e-01 : f32
    %5 = arith.mulf %cst_1, %4 : f32
    %c3 = arith.constant 3 : index
    %6 = memref.load %arg2[%c3] : memref<12xf32, #tpu.memory_space<smem>>
    %cst_2 = arith.constant 5.000000e-01 : f32
    %7 = arith.mulf %cst_2, %6 : f32
    %c4 = arith.constant 4 : index
    %8 = memref.load %arg2[%c4] : memref<12xf32, #tpu.memory_space<smem>>
    %cst_3 = arith.constant 5.000000e-01 : f32
    %9 = arith.mulf %cst_3, %8 : f32
    %c5 = arith.constant 5 : index
    %10 = memref.load %arg2[%c5] : memref<12xf32, #tpu.memory_space<smem>>
    %cst_4 = arith.constant 5.000000e-01 : f32
    %11 = arith.mulf %cst_4, %10 : f32
    %c6 = arith.constant 6 : index
    %12 = memref.load %arg2[%c6] : memref<12xf32, #tpu.memory_space<smem>>
    %c7 = arith.constant 7 : index
    %13 = memref.load %arg2[%c7] : memref<12xf32, #tpu.memory_space<smem>>
    %c8 = arith.constant 8 : index
    %14 = memref.load %arg2[%c8] : memref<12xf32, #tpu.memory_space<smem>>
    %c9 = arith.constant 9 : index
    %15 = memref.load %arg2[%c9] : memref<12xf32, #tpu.memory_space<smem>>
    %cst_5 = arith.constant 5.000000e-01 : f32
    %16 = arith.mulf %cst_5, %15 : f32
    %c10 = arith.constant 10 : index
    %17 = memref.load %arg2[%c10] : memref<12xf32, #tpu.memory_space<smem>>
    %cst_6 = arith.constant 5.000000e-01 : f32
    %18 = arith.mulf %cst_6, %17 : f32
    %c11 = arith.constant 11 : index
    %19 = memref.load %arg2[%c11] : memref<12xf32, #tpu.memory_space<smem>>
    %cst_7 = arith.constant 5.000000e-01 : f32
    %20 = arith.mulf %cst_7, %19 : f32
    %cst_8 = arith.constant 0.000000e+00 : f32
    %21 = vector.broadcast %cst_8 : f32 to vector<8x512xf32>
    %cst_9 = arith.constant 0.000000e+00 : f32
    %22 = vector.broadcast %cst_9 : f32 to vector<8x512xf32>
    %c0_10 = arith.constant 0 : index
    %c0_11 = arith.constant 0 : index
    %c0_12 = arith.constant 0 : index
    %23 = vector.load %arg3[%c0_10, %c0_11, %c0_12] : memref<4x8x512xf32, #tpu.memory_space<vmem>>, vector<1x8x512xf32>
    %24 = vector.shape_cast %23 : vector<1x8x512xf32> to vector<8x512xf32>
    %25 = vector.broadcast %1 : f32 to vector<8x512xf32>
    %26 = arith.mulf %25, %22 : vector<8x512xf32>
    %27 = vector.broadcast %3 : f32 to vector<8x512xf32>
    %28 = arith.mulf %27, %24 : vector<8x512xf32>
    %29 = arith.addf %26, %28 : vector<8x512xf32>
    %30 = vector.broadcast %5 : f32 to vector<8x512xf32>
    %31 = arith.addf %29, %30 : vector<8x512xf32>
    %32 = math.tanh %31 : vector<8x512xf32>
    %33 = vector.broadcast %7 : f32 to vector<8x512xf32>
    %34 = arith.mulf %33, %22 : vector<8x512xf32>
    %35 = vector.broadcast %9 : f32 to vector<8x512xf32>
    %36 = arith.mulf %35, %24 : vector<8x512xf32>
    %37 = arith.addf %34, %36 : vector<8x512xf32>
    %38 = vector.broadcast %11 : f32 to vector<8x512xf32>
    %39 = arith.addf %37, %38 : vector<8x512xf32>
    %40 = math.tanh %39 : vector<8x512xf32>
    %41 = vector.broadcast %12 : f32 to vector<8x512xf32>
    %42 = arith.mulf %41, %22 : vector<8x512xf32>
    %43 = vector.broadcast %13 : f32 to vector<8x512xf32>
    %44 = arith.mulf %43, %24 : vector<8x512xf32>
    %45 = arith.addf %42, %44 : vector<8x512xf32>
    %46 = vector.broadcast %14 : f32 to vector<8x512xf32>
    %47 = arith.addf %45, %46 : vector<8x512xf32>
    %48 = math.tanh %47 : vector<8x512xf32>
    %cst_13 = arith.constant 1.000000e+00 : f32
    %49 = vector.broadcast %cst_13 : f32 to vector<8x512xf32>
    %50 = arith.addf %32, %49 : vector<8x512xf32>
    %51 = arith.mulf %50, %21 : vector<8x512xf32>
    %cst_14 = arith.constant 1.000000e+00 : f32
    %52 = vector.broadcast %cst_14 : f32 to vector<8x512xf32>
    %53 = arith.addf %40, %52 : vector<8x512xf32>
    %54 = arith.mulf %53, %48 : vector<8x512xf32>
    %55 = arith.addf %51, %54 : vector<8x512xf32>
    %cst_15 = arith.constant 5.000000e-01 : f32
    %56 = vector.broadcast %cst_15 : f32 to vector<8x512xf32>
    %57 = arith.mulf %56, %55 : vector<8x512xf32>
    %58 = vector.broadcast %16 : f32 to vector<8x512xf32>
    %59 = arith.mulf %58, %22 : vector<8x512xf32>
    %60 = vector.broadcast %18 : f32 to vector<8x512xf32>
    %61 = arith.mulf %60, %24 : vector<8x512xf32>
    %62 = arith.addf %59, %61 : vector<8x512xf32>
    %63 = vector.broadcast %20 : f32 to vector<8x512xf32>
    %64 = arith.addf %62, %63 : vector<8x512xf32>
    %65 = math.tanh %64 : vector<8x512xf32>
    %cst_16 = arith.constant 5.000000e-01 : f32
    %66 = vector.broadcast %cst_16 : f32 to vector<8x512xf32>
    %67 = arith.mulf %66, %65 : vector<8x512xf32>
    %cst_17 = arith.constant 5.000000e-01 : f32
    %68 = vector.broadcast %cst_17 : f32 to vector<8x512xf32>
    %69 = arith.addf %67, %68 : vector<8x512xf32>
    %70 = math.tanh %57 : vector<8x512xf32>
    %71 = arith.mulf %69, %70 : vector<8x512xf32>
    %c1_18 = arith.constant 1 : index
    %c0_19 = arith.constant 0 : index
    %c0_20 = arith.constant 0 : index
    %72 = vector.load %arg3[%c1_18, %c0_19, %c0_20] : memref<4x8x512xf32, #tpu.memory_space<vmem>>, vector<1x8x512xf32>
    %73 = vector.shape_cast %72 : vector<1x8x512xf32> to vector<8x512xf32>
    %74 = vector.broadcast %1 : f32 to vector<8x512xf32>
    %75 = arith.mulf %74, %57 : vector<8x512xf32>
    %76 = vector.broadcast %3 : f32 to vector<8x512xf32>
    %77 = arith.mulf %76, %73 : vector<8x512xf32>
    %78 = arith.addf %75, %77 : vector<8x512xf32>
    %79 = vector.broadcast %5 : f32 to vector<8x512xf32>
    %80 = arith.addf %78, %79 : vector<8x512xf32>
    %81 = math.tanh %80 : vector<8x512xf32>
    %82 = vector.broadcast %7 : f32 to vector<8x512xf32>
    %83 = arith.mulf %82, %57 : vector<8x512xf32>
    %84 = vector.broadcast %9 : f32 to vector<8x512xf32>
    %85 = arith.mulf %84, %73 : vector<8x512xf32>
    %86 = arith.addf %83, %85 : vector<8x512xf32>
    %87 = vector.broadcast %11 : f32 to vector<8x512xf32>
    %88 = arith.addf %86, %87 : vector<8x512xf32>
    %89 = math.tanh %88 : vector<8x512xf32>
    %90 = vector.broadcast %12 : f32 to vector<8x512xf32>
    %91 = arith.mulf %90, %57 : vector<8x512xf32>
    %92 = vector.broadcast %13 : f32 to vector<8x512xf32>
    %93 = arith.mulf %92, %73 : vector<8x512xf32>
    %94 = arith.addf %91, %93 : vector<8x512xf32>
    %95 = vector.broadcast %14 : f32 to vector<8x512xf32>
    %96 = arith.addf %94, %95 : vector<8x512xf32>
    %97 = math.tanh %96 : vector<8x512xf32>
    %cst_21 = arith.constant 1.000000e+00 : f32
    %98 = vector.broadcast %cst_21 : f32 to vector<8x512xf32>
    %99 = arith.addf %81, %98 : vector<8x512xf32>
    %100 = arith.mulf %99, %71 : vector<8x512xf32>
    %cst_22 = arith.constant 1.000000e+00 : f32
    %101 = vector.broadcast %cst_22 : f32 to vector<8x512xf32>
    %102 = arith.addf %89, %101 : vector<8x512xf32>
    %103 = arith.mulf %102, %97 : vector<8x512xf32>
    %104 = arith.addf %100, %103 : vector<8x512xf32>
    %cst_23 = arith.constant 5.000000e-01 : f32
    %105 = vector.broadcast %cst_23 : f32 to vector<8x512xf32>
    %106 = arith.mulf %105, %104 : vector<8x512xf32>
    %107 = vector.broadcast %16 : f32 to vector<8x512xf32>
    %108 = arith.mulf %107, %57 : vector<8x512xf32>
    %109 = vector.broadcast %18 : f32 to vector<8x512xf32>
    %110 = arith.mulf %109, %73 : vector<8x512xf32>
    %111 = arith.addf %108, %110 : vector<8x512xf32>
    %112 = vector.broadcast %20 : f32 to vector<8x512xf32>
    %113 = arith.addf %111, %112 : vector<8x512xf32>
    %114 = math.tanh %113 : vector<8x512xf32>
    %cst_24 = arith.constant 5.000000e-01 : f32
    %115 = vector.broadcast %cst_24 : f32 to vector<8x512xf32>
    %116 = arith.mulf %115, %114 : vector<8x512xf32>
    %cst_25 = arith.constant 5.000000e-01 : f32
    %117 = vector.broadcast %cst_25 : f32 to vector<8x512xf32>
    %118 = arith.addf %116, %117 : vector<8x512xf32>
    %119 = math.tanh %106 : vector<8x512xf32>
    %120 = arith.mulf %118, %119 : vector<8x512xf32>
    %c2_26 = arith.constant 2 : index
    %c0_27 = arith.constant 0 : index
    %c0_28 = arith.constant 0 : index
    %121 = vector.load %arg3[%c2_26, %c0_27, %c0_28] : memref<4x8x512xf32, #tpu.memory_space<vmem>>, vector<1x8x512xf32>
    %122 = vector.shape_cast %121 : vector<1x8x512xf32> to vector<8x512xf32>
    %123 = vector.broadcast %1 : f32 to vector<8x512xf32>
    %124 = arith.mulf %123, %106 : vector<8x512xf32>
    %125 = vector.broadcast %3 : f32 to vector<8x512xf32>
    %126 = arith.mulf %125, %122 : vector<8x512xf32>
    %127 = arith.addf %124, %126 : vector<8x512xf32>
    %128 = vector.broadcast %5 : f32 to vector<8x512xf32>
    %129 = arith.addf %127, %128 : vector<8x512xf32>
    %130 = math.tanh %129 : vector<8x512xf32>
    %131 = vector.broadcast %7 : f32 to vector<8x512xf32>
    %132 = arith.mulf %131, %106 : vector<8x512xf32>
    %133 = vector.broadcast %9 : f32 to vector<8x512xf32>
    %134 = arith.mulf %133, %122 : vector<8x512xf32>
    %135 = arith.addf %132, %134 : vector<8x512xf32>
    %136 = vector.broadcast %11 : f32 to vector<8x512xf32>
    %137 = arith.addf %135, %136 : vector<8x512xf32>
    %138 = math.tanh %137 : vector<8x512xf32>
    %139 = vector.broadcast %12 : f32 to vector<8x512xf32>
    %140 = arith.mulf %139, %106 : vector<8x512xf32>
    %141 = vector.broadcast %13 : f32 to vector<8x512xf32>
    %142 = arith.mulf %141, %122 : vector<8x512xf32>
    %143 = arith.addf %140, %142 : vector<8x512xf32>
    %144 = vector.broadcast %14 : f32 to vector<8x512xf32>
    %145 = arith.addf %143, %144 : vector<8x512xf32>
    %146 = math.tanh %145 : vector<8x512xf32>
    %cst_29 = arith.constant 1.000000e+00 : f32
    %147 = vector.broadcast %cst_29 : f32 to vector<8x512xf32>
    %148 = arith.addf %130, %147 : vector<8x512xf32>
    %149 = arith.mulf %148, %120 : vector<8x512xf32>
    %cst_30 = arith.constant 1.000000e+00 : f32
    %150 = vector.broadcast %cst_30 : f32 to vector<8x512xf32>
    %151 = arith.addf %138, %150 : vector<8x512xf32>
    %152 = arith.mulf %151, %146 : vector<8x512xf32>
    %153 = arith.addf %149, %152 : vector<8x512xf32>
    %cst_31 = arith.constant 5.000000e-01 : f32
    %154 = vector.broadcast %cst_31 : f32 to vector<8x512xf32>
    %155 = arith.mulf %154, %153 : vector<8x512xf32>
    %156 = vector.broadcast %16 : f32 to vector<8x512xf32>
    %157 = arith.mulf %156, %106 : vector<8x512xf32>
    %158 = vector.broadcast %18 : f32 to vector<8x512xf32>
    %159 = arith.mulf %158, %122 : vector<8x512xf32>
    %160 = arith.addf %157, %159 : vector<8x512xf32>
    %161 = vector.broadcast %20 : f32 to vector<8x512xf32>
    %162 = arith.addf %160, %161 : vector<8x512xf32>
    %163 = math.tanh %162 : vector<8x512xf32>
    %cst_32 = arith.constant 5.000000e-01 : f32
    %164 = vector.broadcast %cst_32 : f32 to vector<8x512xf32>
    %165 = arith.mulf %164, %163 : vector<8x512xf32>
    %cst_33 = arith.constant 5.000000e-01 : f32
    %166 = vector.broadcast %cst_33 : f32 to vector<8x512xf32>
    %167 = arith.addf %165, %166 : vector<8x512xf32>
    %168 = math.tanh %155 : vector<8x512xf32>
    %169 = arith.mulf %167, %168 : vector<8x512xf32>
    %c3_34 = arith.constant 3 : index
    %c0_35 = arith.constant 0 : index
    %c0_36 = arith.constant 0 : index
    %170 = vector.load %arg3[%c3_34, %c0_35, %c0_36] : memref<4x8x512xf32, #tpu.memory_space<vmem>>, vector<1x8x512xf32>
    %171 = vector.shape_cast %170 : vector<1x8x512xf32> to vector<8x512xf32>
    %172 = vector.broadcast %1 : f32 to vector<8x512xf32>
    %173 = arith.mulf %172, %155 : vector<8x512xf32>
    %174 = vector.broadcast %3 : f32 to vector<8x512xf32>
    %175 = arith.mulf %174, %171 : vector<8x512xf32>
    %176 = arith.addf %173, %175 : vector<8x512xf32>
    %177 = vector.broadcast %5 : f32 to vector<8x512xf32>
    %178 = arith.addf %176, %177 : vector<8x512xf32>
    %179 = math.tanh %178 : vector<8x512xf32>
    %180 = vector.broadcast %7 : f32 to vector<8x512xf32>
    %181 = arith.mulf %180, %155 : vector<8x512xf32>
    %182 = vector.broadcast %9 : f32 to vector<8x512xf32>
    %183 = arith.mulf %182, %171 : vector<8x512xf32>
    %184 = arith.addf %181, %183 : vector<8x512xf32>
    %185 = vector.broadcast %11 : f32 to vector<8x512xf32>
    %186 = arith.addf %184, %185 : vector<8x512xf32>
    %187 = math.tanh %186 : vector<8x512xf32>
    %188 = vector.broadcast %12 : f32 to vector<8x512xf32>
    %189 = arith.mulf %188, %155 : vector<8x512xf32>
    %190 = vector.broadcast %13 : f32 to vector<8x512xf32>
    %191 = arith.mulf %190, %171 : vector<8x512xf32>
    %192 = arith.addf %189, %191 : vector<8x512xf32>
    %193 = vector.broadcast %14 : f32 to vector<8x512xf32>
    %194 = arith.addf %192, %193 : vector<8x512xf32>
    %195 = math.tanh %194 : vector<8x512xf32>
    %cst_37 = arith.constant 1.000000e+00 : f32
    %196 = vector.broadcast %cst_37 : f32 to vector<8x512xf32>
    %197 = arith.addf %179, %196 : vector<8x512xf32>
    %198 = arith.mulf %197, %169 : vector<8x512xf32>
    %cst_38 = arith.constant 1.000000e+00 : f32
    %199 = vector.broadcast %cst_38 : f32 to vector<8x512xf32>
    %200 = arith.addf %187, %199 : vector<8x512xf32>
    %201 = arith.mulf %200, %195 : vector<8x512xf32>
    %202 = arith.addf %198, %201 : vector<8x512xf32>
    %cst_39 = arith.constant 5.000000e-01 : f32
    %203 = vector.broadcast %cst_39 : f32 to vector<8x512xf32>
    %204 = arith.mulf %203, %202 : vector<8x512xf32>
    %c0_40 = arith.constant 0 : index
    %c0_41 = arith.constant 0 : index
    %205 = vector.load %arg4[%c0_40, %c0_41] : memref<8x512xf32, #tpu.memory_space<vmem>>, vector<8x512xf32>
    tpu.vector_store %arg4[%c0_40, %c0_41], %204 {strides = array<i32>} : memref<8x512xf32, #tpu.memory_space<vmem>>, vector<8x512xf32>,
    return
  }
  func.func @transform_0(%arg0: i32, %arg1: i32) -> i32 {
    %c0_i32 = arith.constant 0 : i32
    %c0_i32_0 = arith.constant 0 : i32
    return %c0_i32 : i32
  }
  func.func @transform_1(%arg0: i32, %arg1: i32) -> (i32, i32, i32) {
    %c0_i32 = arith.constant 0 : i32
    %c0_i32_0 = arith.constant 0 : i32
    return %c0_i32, %arg0, %arg1 : i32, i32, i32
  }
  func.func @transform_2(%arg0: i32, %arg1: i32) -> (i32, i32) {
    %c0_i32 = arith.constant 0 : i32
    return %arg0, %arg1 : i32, i32
  }
}

</mosaic_0001>

<llo_original>
// kernel: tpu_custom_call.1
$region0: #{tpu_custom_call.1}
  #allocation0 [shape = 'u32[]', space=smem, size = 0x4, offset = 0x4, fixed_abs, tag = 'smem constant byte address 0x4 - core index']
  #allocation1 [shape = 'u32[144,128]{1,0:T(1,128)}', space=vmem, size = 0x12000, scoped, tag = 'internal scratch']
  %s0 = inlined_call_operand.hbm [shape: f32[12], index: 0, kind: input, shape index: {}]
  %s1 = inlined_call_operand.hbm [shape: f32[4,16,512], index: 1, kind: input, shape index: {}]
  %s2 = inlined_call_operand.hbm [shape: f32[16,512], index: 2, kind: output, shape index: {}]
  %s3 = sld [smem:[#allocation0]]
  $region49: #{tpu_custom_call.1} parent=0
    _
  %s5 = ssub.s32 1, %s3
  %s6 = scalar_select 0, %s5, %s3
  $region1: #{tpu_custom_call.1} parent=0
    #allocation2 [shape = 'u8[512]{0}', space=smem, size = 0x200, scoped, tag = 'input window, operand 0, single buffered']
    #allocation3 [shape = 's32[2]{0}', space=sflag, size = 0x8, scoped, tag = 'scoped memory for tpu_custom_call.1']
    #allocation4 [shape = 's32[2]{0}', space=sflag, size = 0x8, scoped, tag = 'scoped memory for tpu_custom_call.1']
    #allocation5 [shape = 's32[2]{0}', space=sflag, size = 0x8, scoped, tag = 'scoped memory for tpu_custom_call.1']
    #allocation6 [shape = 'u8[131072]{0}', space=vmem, size = 0x20000, scoped, tag = 'input window, operand 1']
    #allocation7 [shape = 'u8[32768]{0}', space=vmem, size = 0x8000, scoped, tag = 'output window, operand 0']
    %7 = vsyncpa [#allocation5], 0
    %8 = vsyncpa [#allocation3], 0
    %s9 = scalar_lea.sflag [#allocation3], 1
    %10 = vsyncpa %s9, 0
    %11 = vsyncpa [#allocation4], 0
    %s12 = scalar_lea.sflag [#allocation4], 1
    %13 = vsyncpa %s12, 0
    loop: start=0, step=1, limit=4
    $region2: #{tpu_custom_call.1} parent=1 // loop_pre_header
      _
    $region3: #{tpu_custom_call.1} parent=1 // loop_header
      %s15 = sphi 0, %s19
      %p16 = scmp.ge.s32.totalorder %s15, 4
      %s22 = sphi 0, %s34
      %s23 = sphi 0, %s30
      %s24 = sphi 0, %s22
      %s25 = sphi 0, %s23
      %s26 = sphi 0, %s24
      %s27 = sphi 0, %s25
      %s35 = sphi 0, %s35
      %s37 = sphi 0, %s35
      %s38 = sphi 0, %s37
      %s52 = sphi 0, %s38
      %s60 = sphi 0, %s62
      %s63 = sphi 0, %s60
      %s64 = sphi 0, %s63
      %s80 = sphi 0, %s64
      %s88 = sphi 0, %s90
      %s91 = sphi 0, %s88
      %s92 = sphi 0, %s91
      %s108 = sphi 0, %s92
    $region4: #{tpu_custom_call.1} parent=1 // loop_header_branch
      %18 = sbr.rel (%p16) target = $region8
    $region5: #{tpu_custom_call.1} parent=1 // loop_body
      %s20 = ssub.s32 %s15, 1
      %s21 = ssub.s32 %s15, 2
      %s28 = sadd.s32 1, %s23
      %p29 = scmp.ge.s32.totalorder %s28, 1
      %s30 = scalar_select %p29, 0, %s28
      %s31 = sadd.s32 1, %s22
      %s32 = scalar_select %p29, %s31, %s22
      %p33 = scmp.ge.s32.totalorder %s32, 2
      %s34 = scalar_select %p33, 0, %s32
      %s36 = sadd.s32 %s35, 1
      %p39 = scmp.eq.s32.totalorder %s15, 1
      %p40 = scmp.ne.s32.totalorder %s35, %s37
      %p41 = scmp.eq.s32.totalorder %s15, 0
      %p42 = por %p40, %p41
      %p43 = scmp.ne.s32.totalorder %s35, %s37
      %p44 = scmp.eq.s32.totalorder %s20, 1
      %p45 = por %p43, %p44
      %p46 = scmp.ne.s32.totalorder %s37, %s38
      %p47 = scmp.eq.s32.totalorder %s20, 0
      %p48 = por %p46, %p47
      %p49 = scmp.ne.s32.totalorder %s37, %s38
      %p50 = scmp.eq.s32.totalorder %s21, 1
      %p51 = por %p49, %p50
      %p53 = scmp.ne.s32.totalorder %s38, %s52
      %p54 = scmp.eq.s32.totalorder %s21, 0
      %p55 = por %p53, %p54
      %s56 = ssub.s32 %s22, %s34
      %s57 = ssub.s32 %s23, %s30
      %s58 = sor.u32 %s56, %s57
      %p59 = scmp.eq.s32.totalorder %s58, 0
      %s61 = sadd.s32 %s60, 1
      %s62 = scalar_select %p59, %s60, %s61
      %p65 = pneg %p59
      %p66 = scmp.eq.s32.totalorder %s15, 1
      %p67 = por %p65, %p66
      %p68 = scmp.ne.s32.totalorder %s60, %s63
      %p69 = scmp.eq.s32.totalorder %s15, 0
      %p70 = por %p68, %p69
      %p71 = scmp.ne.s32.totalorder %s60, %s63
      %p72 = scmp.eq.s32.totalorder %s20, 1
      %p73 = por %p71, %p72
      %p74 = scmp.ne.s32.totalorder %s63, %s64
      %p75 = scmp.eq.s32.totalorder %s20, 0
      %p76 = por %p74, %p75
      %p77 = scmp.ne.s32.totalorder %s63, %s64
      %p78 = scmp.eq.s32.totalorder %s21, 1
      %p79 = por %p77, %p78
      %p81 = scmp.ne.s32.totalorder %s64, %s80
      %p82 = scmp.eq.s32.totalorder %s21, 0
      %p83 = por %p81, %p82
      %s84 = ssub.s32 %s22, %s34
      %s85 = ssub.s32 %s23, %s30
      %s86 = sor.u32 %s84, %s85
      %p87 = scmp.eq.s32.totalorder %s86, 0
      %s89 = sadd.s32 %s88, 1
      %s90 = scalar_select %p87, %s88, %s89
      %p93 = pneg %p87
      %p94 = scmp.eq.s32.totalorder %s15, 1
      %p95 = por %p93, %p94
      %p96 = scmp.ne.s32.totalorder %s88, %s91
      %p97 = scmp.eq.s32.totalorder %s15, 0
      %p98 = por %p96, %p97
      %p99 = scmp.ne.s32.totalorder %s88, %s91
      %p100 = scmp.eq.s32.totalorder %s20, 1
      %p101 = por %p99, %p100
      %p102 = scmp.ne.s32.totalorder %s91, %s92
      %p103 = scmp.eq.s32.totalorder %s20, 0
      %p104 = por %p102, %p103
      %p105 = scmp.ne.s32.totalorder %s91, %s92
      %p106 = scmp.eq.s32.totalorder %s21, 1
      %p107 = por %p105, %p106
      %p109 = scmp.ne.s32.totalorder %s92, %s108
      %p110 = scmp.eq.s32.totalorder %s21, 0
      %p111 = por %p109, %p110
      %p112 = scmp.le.s32.totalorder 1, %s15
      %p113 = scmp.lt.s32.totalorder %s15, 3
      %p114 = pnand %p112, %p113
      %p115 = pneg %p114
      // Predicated region
      $region9: #{tpu_custom_call.1} parent=5 // pred_check
        _
      $region10: #{tpu_custom_call.1} parent=5 // pred_check_branch
        %117 = sbr.rel (%p114) target = $region12
      $region11: #{tpu_custom_call.1} parent=5 // pred_region
        %s118 = ssub.s32 %s15, 1
        // Predicated region
        $region13: #{tpu_custom_call.1} parent=11 // pred_check
          %p119 = pneg %p48
        $region14: #{tpu_custom_call.1} parent=11 // pred_check_branch
          %121 = sbr.rel (%p119) target = $region16
        $region15: #{tpu_custom_call.1} parent=11 // pred_region
          %s123 = ssub.s32 16, 16
          %124 = vsyncadd [#allocation5], %s123
          %127 = dma.hbm_to_smem %s0, 16, [#allocation2], [#allocation5]
        $region16: #{tpu_custom_call.1} parent=11 // pred_fallthru
          _
      $region12: #{tpu_custom_call.1} parent=5 // pred_fallthru
        _
      %p128 = scmp.lt.s32.totalorder %s15, 2
      // Predicated region
      $region17: #{tpu_custom_call.1} parent=5 // pred_check
        %p129 = pneg %p128
      $region18: #{tpu_custom_call.1} parent=5 // pred_check_branch
        %131 = sbr.rel (%p129) target = $region20
      $region19: #{tpu_custom_call.1} parent=5 // pred_region
        // Predicated region
        $region21: #{tpu_custom_call.1} parent=19 // pred_check
          %p132 = pneg %p70
        $region22: #{tpu_custom_call.1} parent=19 // pred_check_branch
          %134 = sbr.rel (%p132) target = $region24
        $region23: #{tpu_custom_call.1} parent=19 // pred_region
          %s135 = sand.u32 %s60, 1
          %s136 = scalar_lea.sflag [#allocation3], %s135
          %s137 = sand.u32 %s60, 1
          %s138 = smul.addr %s137, 128
          %s139 = scalar_lea.vmem [#allocation6], %s138
          %s140 = smul.u32 4, %s23
          %s142 = ssub.s32 2048, 2048
          %143 = vsyncadd %s136, %s142
          %s144 = smul.addr %s22, 4
          %s145 = sadd.s32 %s140, %s144
          %s146 = smul.addr %s145, 128
          %s147 = scalar_lea.hbm %s1, %s146
          %s148 = sshll.u32 %s139, 4
          %s149 = int_to_ptr.vmem [resolvable:$true] %s148
          %154 = dma.hbm_to_vmem [thread:$0]  %s147, 2048, %s149, %s136, 1024, 512, 32
        $region24: #{tpu_custom_call.1} parent=19 // pred_fallthru
          _
      $region20: #{tpu_custom_call.1} parent=5 // pred_fallthru
        _
      %p155 = scmp.le.s32.totalorder 1, %s15
      %p156 = scmp.lt.s32.totalorder %s15, 3
      %p157 = pnand %p155, %p156
      %p158 = pneg %p157
      // Predicated region
      $region25: #{tpu_custom_call.1} parent=5 // pred_check
        _
      $region26: #{tpu_custom_call.1} parent=5 // pred_check_branch
        %160 = sbr.rel (%p157) target = $region28
      $region27: #{tpu_custom_call.1} parent=5 // pred_region
        %s161 = ssub.s32 %s15, 1
        // Predicated region
        $region29: #{tpu_custom_call.1} parent=27 // pred_check
          %p162 = pneg %p48
        $region30: #{tpu_custom_call.1} parent=27 // pred_check_branch
          %164 = sbr.rel (%p162) target = $region32
        $region31: #{tpu_custom_call.1} parent=27 // pred_region
          %165 = dma.done [#allocation5], 16
        $region32: #{tpu_custom_call.1} parent=27 // pred_fallthru
          _
        %s166 = sand.u32 %s63, 1
        %s167 = scalar_lea.sflag [#allocation3], %s166
        %s168 = sand.u32 %s63, 1
        %s169 = smul.addr %s168, 128
        %s170 = scalar_lea.vmem [#allocation6], %s169
        // Predicated region
        $region33: #{tpu_custom_call.1} parent=27 // pred_check
          %p171 = pneg %p76
        $region34: #{tpu_custom_call.1} parent=27 // pred_check_branch
          %173 = sbr.rel (%p171) target = $region36
        $region35: #{tpu_custom_call.1} parent=27 // pred_region
          %174 = dma.done %s167, 2048
        $region36: #{tpu_custom_call.1} parent=27 // pred_fallthru
          _
        %175 = sfence
        %p176 = pneg %p48
        %p177 = pneg %p45
        %s178 = sand.u32 %s63, 1
        %s179 = scalar_lea.sflag [#allocation3], %s178
        %s180 = sand.u32 %s63, 1
        %s181 = smul.addr %s180, 128
        %s182 = scalar_lea.vmem [#allocation6], %s181
        %p183 = pneg %p76
        %p184 = pneg %p73
        %p185 = pneg %p104
        %p186 = pneg %p101
        %s187 = sand.u32 %s91, 1
        %s188 = scalar_lea.sflag [#allocation4], %s187
        %s189 = sand.u32 %s91, 1
        %s190 = smul.addr %s189, 32
        %s191 = scalar_lea.vmem [#allocation7], %s190
        %s192 = smul.u32 4, %s25
        %s193 = smul.u32 4, %s25
        %s194 = sld [smem:[#allocation2]]
        %s195 = smul.f32 %s194, 0.5
        %s196 = sld [smem:[#allocation2 + $0x1]]
        %s197 = smul.f32 %s196, 0.5
        %s198 = sld [smem:[#allocation2 + $0x2]]
        %s199 = smul.f32 %s198, 0.5
        %s200 = sld [smem:[#allocation2 + $0x3]]
        %s201 = smul.f32 %s200, 0.5
        %s202 = sld [smem:[#allocation2 + $0x4]]
        %s203 = smul.f32 %s202, 0.5
        %s204 = sld [smem:[#allocation2 + $0x5]]
        %s205 = smul.f32 %s204, 0.5
        %s206 = sld [smem:[#allocation2 + $0x6]]
        %s207 = sld [smem:[#allocation2 + $0x7]]
        %s208 = sld [smem:[#allocation2 + $0x8]]
        %s209 = sld [smem:[#allocation2 + $0x9]]
        %s210 = smul.f32 %s209, 0.5
        %s211 = sld [smem:[#allocation2 + $0xa]]
        %s212 = smul.f32 %s211, 0.5
        %s213 = sld [smem:[#allocation2 + $0xb]]
        %s214 = smul.f32 %s213, 0.5
        %v215 = vld [vmem:[%s170] sm:$0xff]
        %v216 = vld [vmem:[%s170 + $0x8] sm:$0xff]
        %v217 = vld [vmem:[%s170 + $0x10] sm:$0xff]
        %v218 = vld [vmem:[%s170 + $0x18] sm:$0xff]
        %v219 = vstv %s195
        %v220 = vmul.f32 %v219, 0.0
        %v221 = vstv %s197
        %v222 = vmul.f32 %v221, %v215
        %v223 = vmul.f32 %v221, %v216
        %v224 = vmul.f32 %v221, %v217
        %v225 = vmul.f32 %v221, %v218
        %v226 = vadd.f32 %v220, %v222
        %v227 = vadd.f32 %v220, %v223
        %v228 = vadd.f32 %v220, %v224
        %v229 = vadd.f32 %v220, %v225
        %v230 = vstv %s199
        %v231 = vadd.f32 %v226, %v230
        %v232 = vadd.f32 %v227, %v230
        %v233 = vadd.f32 %v228, %v230
        %v234 = vadd.f32 %v229, %v230
        %v235 = vtanh.pop %v231
        %v236 = vtanh.pop %v232
        %v237 = vtanh.pop %v233
        %v238 = vtanh.pop %v234
        %v239 = vstv %s201
        %v240 = vmul.f32 %v239, 0.0
        %v241 = vstv %s203
        %v242 = vmul.f32 %v241, %v215
        %v243 = vmul.f32 %v241, %v216
        %v244 = vmul.f32 %v241, %v217
        %v245 = vmul.f32 %v241, %v218
        %v246 = vadd.f32 %v240, %v242
        %v247 = vadd.f32 %v240, %v243
        %v248 = vadd.f32 %v240, %v244
        %v249 = vadd.f32 %v240, %v245
        %v250 = vstv %s205
        %v251 = vadd.f32 %v246, %v250
        %v252 = vadd.f32 %v247, %v250
        %v253 = vadd.f32 %v248, %v250
        %v254 = vadd.f32 %v249, %v250
        %v255 = vtanh.pop %v251
        %v256 = vtanh.pop %v252
        %v257 = vtanh.pop %v253
        %v258 = vtanh.pop %v254
        %v259 = vstv %s206
        %v260 = vmul.f32 %v259, 0.0
        %v261 = vstv %s207
        %v262 = vmul.f32 %v261, %v215
        %v263 = vmul.f32 %v261, %v216
        %v264 = vmul.f32 %v261, %v217
        %v265 = vmul.f32 %v261, %v218
        %v266 = vadd.f32 %v260, %v262
        %v267 = vadd.f32 %v260, %v263
        %v268 = vadd.f32 %v260, %v264
        %v269 = vadd.f32 %v260, %v265
        %v270 = vstv %s208
        %v271 = vadd.f32 %v266, %v270
        %v272 = vadd.f32 %v267, %v270
        %v273 = vadd.f32 %v268, %v270
        %v274 = vadd.f32 %v269, %v270
        %v275 = vtanh.pop %v271
        %v276 = vtanh.pop %v272
        %v277 = vtanh.pop %v273
        %v278 = vtanh.pop %v274
        %v279 = vadd.f32 %v235, 1.0
        %v280 = vadd.f32 %v236, 1.0
        %v281 = vadd.f32 %v237, 1.0
        %v282 = vadd.f32 %v238, 1.0
        %v283 = vmul.f32 %v279, 0.0
        %v284 = vmul.f32 %v280, 0.0
        %v285 = vmul.f32 %v281, 0.0
        %v286 = vmul.f32 %v282, 0.0
        %v287 = vadd.f32 %v255, 1.0
        %v288 = vadd.f32 %v256, 1.0
        %v289 = vadd.f32 %v257, 1.0
        %v290 = vadd.f32 %v258, 1.0
        %v291 = vmul.f32 %v287, %v275
        %v292 = vmul.f32 %v288, %v276
        %v293 = vmul.f32 %v289, %v277
        %v294 = vmul.f32 %v290, %v278
        %v295 = vadd.f32 %v283, %v291
        %v296 = vadd.f32 %v284, %v292
        %v297 = vadd.f32 %v285, %v293
        %v298 = vadd.f32 %v286, %v294
        %v299 = vmul.f32 %v295, 0.5
        %v300 = vmul.f32 %v296, 0.5
        %v301 = vmul.f32 %v297, 0.5
        %v302 = vmul.f32 %v298, 0.5
        %v303 = vstv %s210
        %v304 = vmul.f32 %v303, 0.0
        %v305 = vstv %s212
        %v306 = vmul.f32 %v305, %v215
        %v307 = vmul.f32 %v305, %v216
        %v308 = vmul.f32 %v305, %v217
        %v309 = vmul.f32 %v305, %v218
        %v310 = vadd.f32 %v304, %v306
        %v311 = vadd.f32 %v304, %v307
        %v312 = vadd.f32 %v304, %v308
        %v313 = vadd.f32 %v304, %v309
        %v314 = vstv %s214
        %v315 = vadd.f32 %v310, %v314
        %v316 = vadd.f32 %v311, %v314
        %v317 = vadd.f32 %v312, %v314
        %v318 = vadd.f32 %v313, %v314
        %v319 = vtanh.pop %v315
        %v320 = vtanh.pop %v316
        %v321 = vtanh.pop %v317
        %v322 = vtanh.pop %v318
        %v323 = vmul.f32 %v319, 0.5
        %v324 = vmul.f32 %v320, 0.5
        %v325 = vmul.f32 %v321, 0.5
        %v326 = vmul.f32 %v322, 0.5
        %v327 = vadd.f32 %v323, 0.5
        %v328 = vadd.f32 %v324, 0.5
        %v329 = vadd.f32 %v325, 0.5
        %v330 = vadd.f32 %v326, 0.5
        %v331 = vtanh.pop %v299
        %v332 = vtanh.pop %v300
        %v333 = vtanh.pop %v301
        %v334 = vtanh.pop %v302
        %v335 = vmul.f32 %v327, %v331
        %v336 = vmul.f32 %v328, %v332
        %v337 = vmul.f32 %v329, %v333
        %v338 = vmul.f32 %v330, %v334
        %s339 = scalar_lea.vmem %s170, 32 [#allocation6]
        %v340 = vld [vmem:[%s339] sm:$0xff]
        %v341 = vld [vmem:[%s339 + $0x8] sm:$0xff]
        %v342 = vld [vmem:[%s339 + $0x10] sm:$0xff]
        %v343 = vld [vmem:[%s339 + $0x18] sm:$0xff]
        %v344 = vmul.f32 %v219, %v299
        %v345 = vmul.f32 %v219, %v300
        %v346 = vmul.f32 %v219, %v301
        %v347 = vmul.f32 %v219, %v302
        %v348 = vmul.f32 %v221, %v340
        %v349 = vmul.f32 %v221, %v341
        %v350 = vmul.f32 %v221, %v342
        %v351 = vmul.f32 %v221, %v343
        %v352 = vadd.f32 %v344, %v348
        %v353 = vadd.f32 %v345, %v349
        %v354 = vadd.f32 %v346, %v350
        %v355 = vadd.f32 %v347, %v351
        %v356 = vadd.f32 %v352, %v230
        %v357 = vadd.f32 %v353, %v230
        %v358 = vadd.f32 %v354, %v230
        %v359 = vadd.f32 %v355, %v230
        %v360 = vtanh.pop %v356
        %v361 = vtanh.pop %v357
        %v362 = vtanh.pop %v358
        %v363 = vtanh.pop %v359
        %v364 = vmul.f32 %v239, %v299
        %v365 = vmul.f32 %v239, %v300
        %v366 = vmul.f32 %v239, %v301
        %v367 = vmul.f32 %v239, %v302
        %v368 = vmul.f32 %v241, %v340
        %v369 = vmul.f32 %v241, %v341
        %v370 = vmul.f32 %v241, %v342
        %v371 = vmul.f32 %v241, %v343
        %v372 = vadd.f32 %v364, %v368
        %v373 = vadd.f32 %v365, %v369
        %v374 = vadd.f32 %v366, %v370
        %v375 = vadd.f32 %v367, %v371
        %v376 = vadd.f32 %v372, %v250
        %v377 = vadd.f32 %v373, %v250
        %v378 = vadd.f32 %v374, %v250
        %v379 = vadd.f32 %v375, %v250
        %v380 = vtanh.pop %v376
        %v381 = vtanh.pop %v377
        %v382 = vtanh.pop %v378
        %v383 = vtanh.pop %v379
        %v384 = vmul.f32 %v259, %v299
        %v385 = vmul.f32 %v259, %v300
        %v386 = vmul.f32 %v259, %v301
        %v387 = vmul.f32 %v259, %v302
        %v388 = vmul.f32 %v261, %v340
        %v389 = vmul.f32 %v261, %v341
        %v390 = vmul.f32 %v261, %v342
        %v391 = vmul.f32 %v261, %v343
        %v392 = vadd.f32 %v384, %v388
        %v393 = vadd.f32 %v385, %v389
        %v394 = vadd.f32 %v386, %v390
        %v395 = vadd.f32 %v387, %v391
        %v396 = vadd.f32 %v392, %v270
        %v397 = vadd.f32 %v393, %v270
        %v398 = vadd.f32 %v394, %v270
        %v399 = vadd.f32 %v395, %v270
        %v400 = vtanh.pop %v396
        %v401 = vtanh.pop %v397
        %v402 = vtanh.pop %v398
        %v403 = vtanh.pop %v399
        %v404 = vadd.f32 %v360, 1.0
        %v405 = vadd.f32 %v361, 1.0
        %v406 = vadd.f32 %v362, 1.0
        %v407 = vadd.f32 %v363, 1.0
        %v408 = vmul.f32 %v404, %v335
        %v409 = vmul.f32 %v405, %v336
        %v410 = vmul.f32 %v406, %v337
        %v411 = vmul.f32 %v407, %v338
        %v412 = vadd.f32 %v380, 1.0
        %v413 = vadd.f32 %v381, 1.0
        %v414 = vadd.f32 %v382, 1.0
        %v415 = vadd.f32 %v383, 1.0
        %v416 = vmul.f32 %v412, %v400
        %v417 = vmul.f32 %v413, %v401
        %v418 = vmul.f32 %v414, %v402
        %v419 = vmul.f32 %v415, %v403
        %v420 = vadd.f32 %v408, %v416
        %v421 = vadd.f32 %v409, %v417
        %v422 = vadd.f32 %v410, %v418
        %v423 = vadd.f32 %v411, %v419
        %v424 = vmul.f32 %v420, 0.5
        %v425 = vmul.f32 %v421, 0.5
        %v426 = vmul.f32 %v422, 0.5
        %v427 = vmul.f32 %v423, 0.5
        %v428 = vmul.f32 %v303, %v299
        %v429 = vmul.f32 %v303, %v300
        %v430 = vmul.f32 %v303, %v301
        %v431 = vmul.f32 %v303, %v302
        %v432 = vmul.f32 %v305, %v340
        %v433 = vmul.f32 %v305, %v341
        %v434 = vmul.f32 %v305, %v342
        %v435 = vmul.f32 %v305, %v343
        %v436 = vadd.f32 %v428, %v432
        %v437 = vadd.f32 %v429, %v433
        %v438 = vadd.f32 %v430, %v434
        %v439 = vadd.f32 %v431, %v435
        %v440 = vadd.f32 %v436, %v314
        %v441 = vadd.f32 %v437, %v314
        %v442 = vadd.f32 %v438, %v314
        %v443 = vadd.f32 %v439, %v314
        %v444 = vtanh.pop %v440
        %v445 = vtanh.pop %v441
        %v446 = vtanh.pop %v442
        %v447 = vtanh.pop %v443
        %v448 = vmul.f32 %v444, 0.5
        %v449 = vmul.f32 %v445, 0.5
        %v450 = vmul.f32 %v446, 0.5
        %v451 = vmul.f32 %v447, 0.5
        %v452 = vadd.f32 %v448, 0.5
        %v453 = vadd.f32 %v449, 0.5
        %v454 = vadd.f32 %v450, 0.5
        %v455 = vadd.f32 %v451, 0.5
        %v456 = vtanh.pop %v424
        %v457 = vtanh.pop %v425
        %v458 = vtanh.pop %v426
        %v459 = vtanh.pop %v427
        %v460 = vmul.f32 %v452, %v456
        %v461 = vmul.f32 %v453, %v457
        %v462 = vmul.f32 %v454, %v458
        %v463 = vmul.f32 %v455, %v459
        %s464 = scalar_lea.vmem %s170, 64 [#allocation6]
        %v465 = vld [vmem:[%s464] sm:$0xff]
        %v466 = vld [vmem:[%s464 + $0x8] sm:$0xff]
        %v467 = vld [vmem:[%s464 + $0x10] sm:$0xff]
        %v468 = vld [vmem:[%s464 + $0x18] sm:$0xff]
        %v469 = vmul.f32 %v219, %v424
        %v470 = vmul.f32 %v219, %v425
        %v471 = vmul.f32 %v219, %v426
        %v472 = vmul.f32 %v219, %v427
        %v473 = vmul.f32 %v221, %v465
        %v474 = vmul.f32 %v221, %v466
        %v475 = vmul.f32 %v221, %v467
        %v476 = vmul.f32 %v221, %v468
        %v477 = vadd.f32 %v469, %v473
        %v478 = vadd.f32 %v470, %v474
        %v479 = vadd.f32 %v471, %v475
        %v480 = vadd.f32 %v472, %v476
        %v481 = vadd.f32 %v477, %v230
        %v482 = vadd.f32 %v478, %v230
        %v483 = vadd.f32 %v479, %v230
        %v484 = vadd.f32 %v480, %v230
        %v485 = vtanh.pop %v481
        %v486 = vtanh.pop %v482
        %v487 = vtanh.pop %v483
        %v488 = vtanh.pop %v484
        %v489 = vmul.f32 %v239, %v424
        %v490 = vmul.f32 %v239, %v425
        %v491 = vmul.f32 %v239, %v426
        %v492 = vmul.f32 %v239, %v427
        %v493 = vmul.f32 %v241, %v465
        %v494 = vmul.f32 %v241, %v466
        %v495 = vmul.f32 %v241, %v467
        %v496 = vmul.f32 %v241, %v468
        %v497 = vadd.f32 %v489, %v493
        %v498 = vadd.f32 %v490, %v494
        %v499 = vadd.f32 %v491, %v495
        %v500 = vadd.f32 %v492, %v496
        %v501 = vadd.f32 %v497, %v250
        %v502 = vadd.f32 %v498, %v250
        %v503 = vadd.f32 %v499, %v250
        %v504 = vadd.f32 %v500, %v250
        %v505 = vtanh.pop %v501
        %v506 = vtanh.pop %v502
        %v507 = vtanh.pop %v503
        %v508 = vtanh.pop %v504
        %v509 = vmul.f32 %v259, %v424
        %v510 = vmul.f32 %v259, %v425
        %v511 = vmul.f32 %v259, %v426
        %v512 = vmul.f32 %v259, %v427
        %v513 = vmul.f32 %v261, %v465
        %v514 = vmul.f32 %v261, %v466
        %v515 = vmul.f32 %v261, %v467
        %v516 = vmul.f32 %v261, %v468
        %v517 = vadd.f32 %v509, %v513
        %v518 = vadd.f32 %v510, %v514
        %v519 = vadd.f32 %v511, %v515
        %v520 = vadd.f32 %v512, %v516
        %v521 = vadd.f32 %v517, %v270
        %v522 = vadd.f32 %v518, %v270
        %v523 = vadd.f32 %v519, %v270
        %v524 = vadd.f32 %v520, %v270
        %v525 = vtanh.pop %v521
        %v526 = vtanh.pop %v522
        %v527 = vtanh.pop %v523
        %v528 = vtanh.pop %v524
        %v529 = vadd.f32 %v485, 1.0
        %v530 = vadd.f32 %v486, 1.0
        %v531 = vadd.f32 %v487, 1.0
        %v532 = vadd.f32 %v488, 1.0
        %v533 = vmul.f32 %v529, %v460
        %v534 = vmul.f32 %v530, %v461
        %v535 = vmul.f32 %v531, %v462
        %v536 = vmul.f32 %v532, %v463
        %v537 = vadd.f32 %v505, 1.0
        %v538 = vadd.f32 %v506, 1.0
        %v539 = vadd.f32 %v507, 1.0
        %v540 = vadd.f32 %v508, 1.0
        %v541 = vmul.f32 %v537, %v525
        %v542 = vmul.f32 %v538, %v526
        %v543 = vmul.f32 %v539, %v527
        %v544 = vmul.f32 %v540, %v528
        %v545 = vadd.f32 %v533, %v541
        %v546 = vadd.f32 %v534, %v542
        %v547 = vadd.f32 %v535, %v543
        %v548 = vadd.f32 %v536, %v544
        %v549 = vmul.f32 %v545, 0.5
        %v550 = vmul.f32 %v546, 0.5
        %v551 = vmul.f32 %v547, 0.5
        %v552 = vmul.f32 %v548, 0.5
        %v553 = vmul.f32 %v303, %v424
        %v554 = vmul.f32 %v303, %v425
        %v555 = vmul.f32 %v303, %v426
        %v556 = vmul.f32 %v303, %v427
        %v557 = vmul.f32 %v305, %v465
        %v558 = vmul.f32 %v305, %v466
        %v559 = vmul.f32 %v305, %v467
        %v560 = vmul.f32 %v305, %v468
        %v561 = vadd.f32 %v553, %v557
        %v562 = vadd.f32 %v554, %v558
        %v563 = vadd.f32 %v555, %v559
        %v564 = vadd.f32 %v556, %v560
        %v565 = vadd.f32 %v561, %v314
        %v566 = vadd.f32 %v562, %v314
        %v567 = vadd.f32 %v563, %v314
        %v568 = vadd.f32 %v564, %v314
        %v569 = vtanh.pop %v565
        %v570 = vtanh.pop %v566
        %v571 = vtanh.pop %v567
        %v572 = vtanh.pop %v568
        %v573 = vmul.f32 %v569, 0.5
        %v574 = vmul.f32 %v570, 0.5
        %v575 = vmul.f32 %v571, 0.5
        %v576 = vmul.f32 %v572, 0.5
        %v577 = vadd.f32 %v573, 0.5
        %v578 = vadd.f32 %v574, 0.5
        %v579 = vadd.f32 %v575, 0.5
        %v580 = vadd.f32 %v576, 0.5
        %v581 = vtanh.pop %v549
        %v582 = vtanh.pop %v550
        %v583 = vtanh.pop %v551
        %v584 = vtanh.pop %v552
        %v585 = vmul.f32 %v577, %v581
        %v586 = vmul.f32 %v578, %v582
        %v587 = vmul.f32 %v579, %v583
        %v588 = vmul.f32 %v580, %v584
        %s589 = scalar_lea.vmem %s170, 96 [#allocation6]
        %v590 = vld [vmem:[%s589] sm:$0xff]
        %v591 = vld [vmem:[%s589 + $0x8] sm:$0xff]
        %v592 = vld [vmem:[%s589 + $0x10] sm:$0xff]
        %v593 = vld [vmem:[%s589 + $0x18] sm:$0xff]
        %v594 = vmul.f32 %v219, %v549
        %v595 = vmul.f32 %v219, %v550
        %v596 = vmul.f32 %v219, %v551
        %v597 = vmul.f32 %v219, %v552
        %v598 = vmul.f32 %v221, %v590
        %v599 = vmul.f32 %v221, %v591
        %v600 = vmul.f32 %v221, %v592
        %v601 = vmul.f32 %v221, %v593
        %v602 = vadd.f32 %v594, %v598
        %v603 = vadd.f32 %v595, %v599
        %v604 = vadd.f32 %v596, %v600
        %v605 = vadd.f32 %v597, %v601
        %v606 = vadd.f32 %v602, %v230
        %v607 = vadd.f32 %v603, %v230
        %v608 = vadd.f32 %v604, %v230
        %v609 = vadd.f32 %v605, %v230
        %v610 = vtanh.pop %v606
        %v611 = vtanh.pop %v607
        %v612 = vtanh.pop %v608
        %v613 = vtanh.pop %v609
        %v614 = vmul.f32 %v239, %v549
        %v615 = vmul.f32 %v239, %v550
        %v616 = vmul.f32 %v239, %v551
        %v617 = vmul.f32 %v239, %v552
        %v618 = vmul.f32 %v241, %v590
        %v619 = vmul.f32 %v241, %v591
        %v620 = vmul.f32 %v241, %v592
        %v621 = vmul.f32 %v241, %v593
        %v622 = vadd.f32 %v614, %v618
        %v623 = vadd.f32 %v615, %v619
        %v624 = vadd.f32 %v616, %v620
        %v625 = vadd.f32 %v617, %v621
        %v626 = vadd.f32 %v622, %v250
        %v627 = vadd.f32 %v623, %v250
        %v628 = vadd.f32 %v624, %v250
        %v629 = vadd.f32 %v625, %v250
        %v630 = vtanh.pop %v626
        %v631 = vtanh.pop %v627
        %v632 = vtanh.pop %v628
        %v633 = vtanh.pop %v629
        %v634 = vmul.f32 %v259, %v549
        %v635 = vmul.f32 %v259, %v550
        %v636 = vmul.f32 %v259, %v551
        %v637 = vmul.f32 %v259, %v552
        %v638 = vmul.f32 %v261, %v590
        %v639 = vmul.f32 %v261, %v591
        %v640 = vmul.f32 %v261, %v592
        %v641 = vmul.f32 %v261, %v593
        %v642 = vadd.f32 %v634, %v638
        %v643 = vadd.f32 %v635, %v639
        %v644 = vadd.f32 %v636, %v640
        %v645 = vadd.f32 %v637, %v641
        %v646 = vadd.f32 %v642, %v270
        %v647 = vadd.f32 %v643, %v270
        %v648 = vadd.f32 %v644, %v270
        %v649 = vadd.f32 %v645, %v270
        %v650 = vtanh.pop %v646
        %v651 = vtanh.pop %v647
        %v652 = vtanh.pop %v648
        %v653 = vtanh.pop %v649
        %v654 = vadd.f32 %v610, 1.0
        %v655 = vadd.f32 %v611, 1.0
        %v656 = vadd.f32 %v612, 1.0
        %v657 = vadd.f32 %v613, 1.0
        %v658 = vmul.f32 %v654, %v585
        %v659 = vmul.f32 %v655, %v586
        %v660 = vmul.f32 %v656, %v587
        %v661 = vmul.f32 %v657, %v588
        %v662 = vadd.f32 %v630, 1.0
        %v663 = vadd.f32 %v631, 1.0
        %v664 = vadd.f32 %v632, 1.0
        %v665 = vadd.f32 %v633, 1.0
        %v666 = vmul.f32 %v662, %v650
        %v667 = vmul.f32 %v663, %v651
        %v668 = vmul.f32 %v664, %v652
        %v669 = vmul.f32 %v665, %v653
        %v670 = vadd.f32 %v658, %v666
        %v671 = vadd.f32 %v659, %v667
        %v672 = vadd.f32 %v660, %v668
        %v673 = vadd.f32 %v661, %v669
        %v674 = vmul.f32 %v670, 0.5
        %v675 = vmul.f32 %v671, 0.5
        %v676 = vmul.f32 %v672, 0.5
        %v677 = vmul.f32 %v673, 0.5
        %678 = vst [vmem:[%s191] sm:$0xff] %v674
        %679 = vst [vmem:[%s191 + $0x8] sm:$0xff] %v675
        %680 = vst [vmem:[%s191 + $0x10] sm:$0xff] %v676
        %681 = vst [vmem:[%s191 + $0x18] sm:$0xff] %v677
        %s682 = sand.u32 %s91, 1
        %s683 = scalar_lea.sflag [#allocation4], %s682
        %s684 = sand.u32 %s91, 1
        %s685 = smul.addr %s684, 32
        %s686 = scalar_lea.vmem [#allocation7], %s685
        // Predicated region
        $region37: #{tpu_custom_call.1} parent=27 // pred_check
          %p687 = pneg %p101
        $region38: #{tpu_custom_call.1} parent=27 // pred_check_branch
          %689 = sbr.rel (%p687) target = $region40
        $region39: #{tpu_custom_call.1} parent=27 // pred_region
          %s690 = smul.u32 4, %s25
          %s692 = ssub.s32 512, 512
          %693 = vsyncadd %s683, %s692
          %s694 = smul.addr %s24, 4
          %s695 = sadd.s32 %s690, %s694
          %s696 = smul.addr %s695, 128
          %s697 = scalar_lea.hbm %s2, %s696
          %s699 = sshll.u32 %s686, 4
          %s700 = int_to_ptr.vmem [resolvable:$true] %s699
          %702 = dma.vmem_to_hbm [thread:$0]  %s700, 512, %s697, %s683
        $region40: #{tpu_custom_call.1} parent=27 // pred_fallthru
          _
      $region28: #{tpu_custom_call.1} parent=5 // pred_fallthru
        _
      %p703 = scmp.le.s32.totalorder 2, %s15
      // Predicated region
      $region41: #{tpu_custom_call.1} parent=5 // pred_check
        %p704 = pneg %p703
      $region42: #{tpu_custom_call.1} parent=5 // pred_check_branch
        %706 = sbr.rel (%p704) target = $region44
      $region43: #{tpu_custom_call.1} parent=5 // pred_region
        %s707 = ssub.s32 %s15, 2
        // Predicated region
        $region45: #{tpu_custom_call.1} parent=43 // pred_check
          %p708 = pneg %p107
        $region46: #{tpu_custom_call.1} parent=43 // pred_check_branch
          %710 = sbr.rel (%p708) target = $region48
        $region47: #{tpu_custom_call.1} parent=43 // pred_region
          %s711 = sand.u32 %s92, 1
          %s712 = scalar_lea.sflag [#allocation4], %s711
          %s713 = sand.u32 %s92, 1
          %s714 = smul.addr %s713, 32
          %s715 = scalar_lea.vmem [#allocation7], %s714
          %716 = dma.done %s712, 512
        $region48: #{tpu_custom_call.1} parent=43 // pred_fallthru
          _
      $region44: #{tpu_custom_call.1} parent=5 // pred_fallthru
        _
    $region6: #{tpu_custom_call.1} parent=1 // loop_footer
      %s19 = sadd.s32 1, %s15
    $region7: #{tpu_custom_call.1} parent=1 // loop_footer_branch
      %14 = sbr.rel target = $region3
    $region8: #{tpu_custom_call.1} parent=1 // loop_exit
      _
    %717 = vsyncpa [#allocation3], 1
    %s718 = scalar_lea.sflag [#allocation3], 1
    %719 = vsyncpa %s718, 1
    %720 = vsyncpa [#allocation4], 1
    %s721 = scalar_lea.sflag [#allocation4], 1
    %722 = vsyncpa %s721, 1
    %723 = vsyncpa [#allocation5], 1
    %s724 = scalar_lea.sflag [#allocation5], 1
    %725 = vsyncpa %s724, 1

</llo_original>
